<compile_context>
chip_gen: v6e
topology: v6e:2x2x1
jax: 0.10.0
libtpu: 0.0.40
codegen_flags: <defaults>
</compile_context>

<pallas_src>
import math
import functools

import jax
import jax.numpy as jnp
from jax import lax
from jax.experimental import pallas as pl
from jax.experimental.pallas import tpu as pltpu


_VMEM_LIMIT = 64 * 1024 * 1024  # explicit scoped-VMEM budget (working set per step is only a few MiB)


def _cdiv(a, b):
    return -(-a // b)


def _round_up(a, b):
    return _cdiv(a, b) * b


# ----------------------------- in-kernel helpers ----------------------------- #

def _gelu_exact(x):
    # nn.GELU() default is the exact erf formulation.
    return 0.5 * x * (1.0 + lax.erf(x * (1.0 / math.sqrt(2.0))))


def _fill_window(xwin_ref, xm_ref, xh_ref, tile_ls):
    """Stitch the main input tile and its halo rows into one contiguous f32 window."""
    h_blk = xh_ref.shape[1]
    xwin_ref[0:tile_ls, :] = xm_ref[0].astype(jnp.float32)
    xwin_ref[tile_ls:tile_ls + h_blk, :] = xh_ref[0].astype(jnp.float32)


def _tap_slice(j, tile_l, stride):
    return pl.ds(j, tile_l, stride=stride) if stride > 1 else pl.ds(j, tile_l)


def _conv_taps_mxu(xwin_ref, w_ref, *, k, stride, tile_l):
    """y[t, co] = sum_{j, c} x[t*stride + j, c] * w[j, c, co]   (bf16 MXU, f32 accumulation)."""
    c_out = w_ref.shape[-1]
    acc = jnp.zeros((tile_l, c_out), jnp.float32)
    for j in range(k):
        xs = xwin_ref[_tap_slice(j, tile_l, stride), :].astype(jnp.bfloat16)   # (tile_l, c_in)
        acc = acc + jnp.dot(xs, w_ref[j], preferred_element_type=jnp.float32)
    return acc


def _conv_taps_c1(xwin_ref, w_ref, *, k, stride, tile_l):
    """Layer-0 conv (c_in == 1): K VPU broadcast-FMAs; the MXU contraction would be depth 1."""
    c_out = w_ref.shape[-1]
    acc = jnp.zeros((tile_l, c_out), jnp.float32)
    for j in range(k):
        xs = xwin_ref[_tap_slice(j, tile_l, stride), :]                         # (tile_l, 1) f32
        acc = acc + xs * w_ref[j:j + 1, :]                                      # (1, c_out) broadcast
    return acc


# --------------------------------- kernels --------------------------------- #

def _conv_gelu_kernel(xm_ref, xh_ref, w_ref, o_ref, xwin_ref, *, k, stride, tile_l, tile_ls):
    _fill_window(xwin_ref, xm_ref, xh_ref, tile_ls)
    y = _conv_taps_mxu(xwin_ref, w_ref, k=k, stride=stride, tile_l=tile_l)
    o_ref[0] = _gelu_exact(y).astype(o_ref.dtype)


def _conv_gn_stats_kernel(xm_ref, xh_ref, w_ref, ssum_ref, ssq_ref, xwin_ref, *,
                          k, stride, tile_l, tile_ls, l_out):
    l = pl.program_id(1)

    @pl.when(l == 0)
    def _():
        ssum_ref[...] = jnp.zeros_like(ssum_ref)
        ssq_ref[...] = jnp.zeros_like(ssq_ref)

    _fill_window(xwin_ref, xm_ref, xh_ref, tile_ls)
    y = _conv_taps_c1(xwin_ref, w_ref, k=k, stride=stride, tile_l=tile_l)        # (tile_l, c_out) f32
    row = l * tile_l + lax.broadcasted_iota(jnp.int32, (tile_l, 1), 0)
    ym = jnp.where(row < l_out, y, 0.0)                                           # mask pad columns
    ssum_ref[0] = ssum_ref[0] + jnp.sum(ym, axis=0, keepdims=True)
    ssq_ref[0] = ssq_ref[0] + jnp.sum(ym * ym, axis=0, keepdims=True)


def _conv_gn_gelu_kernel(xm_ref, xh_ref, w_ref, scale_ref, shift_ref, o_ref, xwin_ref, *,
                         k, stride, tile_l, tile_ls):
    _fill_window(xwin_ref, xm_ref, xh_ref, tile_ls)
    y = _conv_taps_c1(xwin_ref, w_ref, k=k, stride=stride, tile_l=tile_l)
    y = y * scale_ref[0] + shift_ref[0]            # GroupNorm with affine folded into scale/shift
    o_ref[0] = _gelu_exact(y).astype(o_ref.dtype)


# ------------------------------ layer wrappers ------------------------------ #

def _plan_layer(l_in_real, k, stride, max_tile_l):
    l_out = (l_in_real - k) // stride + 1
    assert l_out >= 1, "input too short for this conv stack"
    h_blk = 8 * _cdiv(max(k - stride, 1), 8)        # halo rows, rounded to a sublane multiple
    tile_l = min(max_tile_l, _round_up(l_out, 8))
    tile_l = _round_up(tile_l, h_blk)               # guarantees (tile_l*stride) % h_blk == 0
    n_tiles = _cdiv(l_out, tile_l)
    tile_ls = tile_l * stride
    return dict(l_out=l_out, k=k, stride=stride, tile_l=tile_l, tile_ls=tile_ls,
                h_blk=h_blk, n_tiles=n_tiles, in_need=n_tiles * tile_ls + h_blk)


def _x_specs(pm, c_in):
    tile_ls, h_blk = pm["tile_ls"], pm["h_blk"]
    r = tile_ls // h_blk
    main = pl.BlockSpec((1, tile_ls, c_in), lambda b, l: (b, l, 0))
    halo = pl.BlockSpec((1, h_blk, c_in), lambda b, l: (b, (l + 1) * r, 0))
    return [main, halo]


def _conv_gelu_layer(x_nlc, w, pm, out_alloc):
    """Conv1d(bias=False) + GELU, NLC in / NLC out (bf16)."""
    B, _, c_in = x_nlc.shape
    c_out, c_in_w, k = w.shape
    assert c_in_w == c_in
    s, tile_l, tile_ls, h_blk, n_tiles = (pm["stride"], pm["tile_l"], pm["tile_ls"],
                                          pm["h_blk"], pm["n_tiles"])
    wt = jnp.transpose(w, (2, 1, 0)).astype(jnp.bfloat16)            # (k, c_in, c_out)

    kern = functools.partial(_conv_gelu_kernel, k=k, stride=s, tile_l=tile_l, tile_ls=tile_ls)
    cost = pl.CostEstimate(
        flops=2 * B * n_tiles * tile_l * c_in * c_out * k,
        transcendentals=B * n_tiles * tile_l * c_out,
        bytes_accessed=B * n_tiles * (tile_ls * c_in + tile_l * c_out) * 2 + k * c_in * c_out * 2,
    )
    return pl.pallas_call(
        kern,
        out_shape=jax.ShapeDtypeStruct((B, out_alloc, c_out), jnp.bfloat16),
        grid=(B, n_tiles),
        in_specs=_x_specs(pm, c_in) + [pl.BlockSpec((k, c_in, c_out), lambda b, l: (0, 0, 0))],
        out_specs=pl.BlockSpec((1, tile_l, c_out), lambda b, l: (b, l, 0)),
        scratch_shapes=[pltpu.VMEM((tile_ls + h_blk, c_in), jnp.float32)],
        compiler_params=pltpu.CompilerParams(
            dimension_semantics=("parallel", "parallel"),
            vmem_limit_bytes=_VMEM_LIMIT),
        cost_estimate=cost,
    )(x_nlc, x_nlc, wt)


def _conv_gn_gelu_layer0(x_nlc, w, gamma, beta, pm, out_alloc, *, eps=1e-5):
    """Layer 0: Conv1d(1, c_out) + Fp32GroupNorm(c_out groups, affine) + GELU, L-tiled two-pass."""
    B = x_nlc.shape[0]
    c_out, _, k = w.shape
    s, tile_l, tile_ls, h_blk, n_tiles, l_out = (pm["stride"], pm["tile_l"], pm["tile_ls"],
                                                 pm["h_blk"], pm["n_tiles"], pm["l_out"])
    w0 = jnp.transpose(w[:, 0, :], (1, 0)).astype(jnp.float32)       # (k, c_out), VPU path
    x_specs = _x_specs(pm, 1)
    w_spec = pl.BlockSpec((k, c_out), lambda b, l: (0, 0))
    vec_spec = pl.BlockSpec((1, 1, c_out), lambda b, l: (b, 0, 0))
    scratch = [pltpu.VMEM((tile_ls + h_blk, 1), jnp.float32)]

    # Pass 1: conv + single-pass sum / sum-of-squares over the real (unpadded) columns.
    stats_kern = functools.partial(_conv_gn_stats_kernel, k=k, stride=s,
                                   tile_l=tile_l, tile_ls=tile_ls, l_out=l_out)
    ssum, ssq = pl.pallas_call(
        stats_kern,
        out_shape=(jax.ShapeDtypeStruct((B, 1, c_out), jnp.float32),
                   jax.ShapeDtypeStruct((B, 1, c_out), jnp.float32)),
        grid=(B, n_tiles),
        in_specs=x_specs + [w_spec],
        out_specs=(pl.BlockSpec((1, 1, c_out), lambda b, l: (b, 0, 0)),
                   pl.BlockSpec((1, 1, c_out), lambda b, l: (b, 0, 0))),
        scratch_shapes=scratch,
        compiler_params=pltpu.CompilerParams(
            dimension_semantics=("parallel", "arbitrary"),
            vmem_limit_bytes=_VMEM_LIMIT),
    )(x_nlc, x_nlc, w0)

    cnt = jnp.float32(l_out)
    mean = ssum[:, 0, :] / cnt                                        # (B, c_out)
    var = jnp.maximum(ssq[:, 0, :] / cnt - mean * mean, 0.0)          # biased variance (torch GN)
    g_rstd = gamma[None, :] * lax.rsqrt(var + eps)
    scale = g_rstd[:, None, :]                                        # (B, 1, c_out)
    shift = (beta[None, :] - mean * g_rstd)[:, None, :]

    # Pass 2: recompute the (cheap, c_in==1) conv, normalize + affine + GELU, write bf16 output.
    norm_kern = functools.partial(_conv_gn_gelu_kernel, k=k, stride=s,
                                  tile_l=tile_l, tile_ls=tile_ls)
    cost = pl.CostEstimate(
        flops=2 * B * n_tiles * tile_l * c_out * (k + 2),
        transcendentals=B * n_tiles * tile_l * c_out,
        bytes_accessed=B * n_tiles * (tile_ls * 4 + tile_l * c_out * 2) + k * c_out * 4,
    )
    return pl.pallas_call(
        norm_kern,
        out_shape=jax.ShapeDtypeStruct((B, out_alloc, c_out), jnp.bfloat16),
        grid=(B, n_tiles),
        in_specs=x_specs + [w_spec, vec_spec, vec_spec],
        out_specs=pl.BlockSpec((1, tile_l, c_out), lambda b, l: (b, l, 0)),
        scratch_shapes=scratch,
        compiler_params=pltpu.CompilerParams(
            dimension_semantics=("parallel", "parallel"),
            vmem_limit_bytes=_VMEM_LIMIT),
        cost_estimate=cost,
    )(x_nlc, x_nlc, w0, scale, shift)


# --------------------------- model init / forward --------------------------- #

def init_conv_feature_extractor(conv_layers, key):
    """conv_layers: list of (dim, kernel, stride). Kaiming-normal init (fan_in, gain=sqrt(2)),
    matching nn.init.kaiming_normal_ statistics. GroupNorm affine: ones / zeros (PyTorch default)."""
    params = []
    in_d = 1
    for i, (dim, k, stride) in enumerate(conv_layers):
        key, wk = jax.random.split(key)
        std = math.sqrt(2.0 / (in_d * k))
        w = jax.random.normal(wk, (dim, in_d, k), jnp.float32) * std
        gamma = jnp.ones((dim,), jnp.float32) if i == 0 else None
        beta = jnp.zeros((dim,), jnp.float32) if i == 0 else None
        params.append(dict(w=w, gamma=gamma, beta=beta, stride=stride))
        in_d = dim
    return params


def conv_feature_extraction(x, params, *, max_tile_l=512):
    """x: (B, 1, L) float32 in PyTorch's NCL layout -> (B, C_last, L_last) float32.
    Dropout p=0.0 is an identity and therefore omitted."""
    B, c_in0, L = x.shape
    assert c_in0 == 1

    plans, l_real = [], L
    for p in params:
        pm = _plan_layer(l_real, p["w"].shape[-1], p["stride"], max_tile_l)
        plans.append(pm)
        l_real = pm["l_out"]

    h = jnp.reshape(x, (B, L, 1))            # NCL -> NLC (free reshape since c_in == 1)
    for i, (p, pm) in enumerate(zip(params, plans)):
        if h.shape[1] < pm["in_need"]:
            h = jnp.pad(h, ((0, 0), (0, pm["in_need"] - h.shape[1]), (0, 0)))
        out_alloc = pm["n_tiles"] * pm["tile_l"]
        if i + 1 < len(plans):
            # Allocate the next layer's padded input length directly so no pad-copy is needed
            # between layers; unwritten pad rows only ever feed discarded pad columns.
            out_alloc = max(out_alloc, plans[i + 1]["in_need"])
        if i == 0:
            h = _conv_gn_gelu_layer0(h, p["w"], p["gamma"], p["beta"], pm, out_alloc)
        else:
            h = _conv_gelu_layer(h, p["w"], pm, out_alloc)

    y = h[:, : plans[-1]["l_out"], :]
    return jnp.transpose(y, (0, 2, 1)).astype(jnp.float32)


# ---------------------------------- main ---------------------------------- #

if __name__ == "__main__":
    # Small, module-consistent shapes: input (B=2, C=1, L=64), two conv layers.
    conv_layers = [(32, 4, 2), (32, 3, 2)]

    key = jax.random.PRNGKey(0)
    key, pkey, xkey = jax.random.split(key, 3)
    params = init_conv_feature_extractor(conv_layers, pkey)

    x = jax.random.normal(xkey, (2, 1, 64), jnp.float32)

    out = conv_feature_extraction(x, params)
    out = jax.block_until_ready(out)

    # Expected output: L: 64 -> (64-4)//2+1 = 31 -> (31-3)//2+1 = 15  =>  (2, 32, 15)
    assert out.shape == (2, 32, 15), out.shape
    assert bool(jnp.all(jnp.isfinite(out)))
    print("KERNEL_OK")
</pallas_src>

<mosaic_0001>
module attributes {stable_mosaic.version = 11 : i64} {
  func.func @_conv_gn_stats_kernel(%arg0: i32, %arg1: i32, %arg2: memref<1x64x1xf32, #tpu.memory_space<vmem>>, %arg3: memref<1x8x1xf32, #tpu.memory_space<vmem>>, %arg4: memref<4x32xf32, #tpu.memory_space<vmem>>, %arg5: memref<1x1x32xf32, #tpu.memory_space<vmem>>, %arg6: memref<1x1x32xf32, #tpu.memory_space<vmem>>, %arg7: memref<72x1xf32, #tpu.memory_space<vmem>>) attributes {dimension_semantics = [#tpu.dimension_semantics<parallel>, #tpu.dimension_semantics<arbitrary>], iteration_bounds = array<i64: 2, 1>, scalar_prefetch = 0 : i64, scratch_operands = 1 : i64, tpu.core_type = #tpu.core_type<tc>, window_params = [{transform_indices = @transform_0, window_bounds = array<i64: 1, 64, 1>}, {transform_indices = @transform_1, window_bounds = array<i64: 1, 8, 1>}, {pipeline_mode = #tpu.pipeline_mode<synchronous>, transform_indices = @transform_2, window_bounds = array<i64: 4, 32>}, {transform_indices = @transform_3, window_bounds = array<i64: 1, 1, 32>}, {transform_indices = @transform_4, window_bounds = array<i64: 1, 1, 32>}]} {
    %c0_i32 = arith.constant 0 : i32
    %0 = arith.cmpi eq, %arg1, %c0_i32 : i32
    %1 = arith.extui %0 : i1 to i32
    %c0_i32_0 = arith.constant 0 : i32
    %2 = arith.cmpi ne, %1, %c0_i32_0 : i32
    scf.if %2 {
      %cst_37 = arith.constant 0.000000e+00 : f32
      %61 = vector.broadcast %cst_37 : f32 to vector<1x1x32xf32>
      %c0_38 = arith.constant 0 : index
      %c0_39 = arith.constant 0 : index
      %c0_40 = arith.constant 0 : index
      %62 = vector.load %arg5[%c0_38, %c0_39, %c0_40] : memref<1x1x32xf32, #tpu.memory_space<vmem>>, vector<1x1x32xf32>
      tpu.vector_store %arg5[%c0_38, %c0_39, %c0_40], %61 {strides = array<i32>} : memref<1x1x32xf32, #tpu.memory_space<vmem>>, vector<1x1x32xf32>,
      %cst_41 = arith.constant 0.000000e+00 : f32
      %63 = vector.broadcast %cst_41 : f32 to vector<1x1x32xf32>
      %c0_42 = arith.constant 0 : index
      %c0_43 = arith.constant 0 : index
      %c0_44 = arith.constant 0 : index
      %64 = vector.load %arg6[%c0_42, %c0_43, %c0_44] : memref<1x1x32xf32, #tpu.memory_space<vmem>>, vector<1x1x32xf32>
      tpu.vector_store %arg6[%c0_42, %c0_43, %c0_44], %63 {strides = array<i32>} : memref<1x1x32xf32, #tpu.memory_space<vmem>>, vector<1x1x32xf32>,
    } else {
    }
    %c0 = arith.constant 0 : index
    %c0_1 = arith.constant 0 : index
    %c0_2 = arith.constant 0 : index
    %3 = vector.load %arg2[%c0, %c0_1, %c0_2] : memref<1x64x1xf32, #tpu.memory_space<vmem>>, vector<1x64x1xf32>
    %4 = vector.shape_cast %3 : vector<1x64x1xf32> to vector<64x1xf32>
    %c0_3 = arith.constant 0 : index
    %c0_4 = arith.constant 0 : index
    %5 = vector.load %arg7[%c0_3, %c0_4] : memref<72x1xf32, #tpu.memory_space<vmem>>, vector<64x1xf32>
    tpu.vector_store %arg7[%c0_3, %c0_4], %4 {strides = array<i32>} : memref<72x1xf32, #tpu.memory_space<vmem>>, vector<64x1xf32>,
    %c0_5 = arith.constant 0 : index
    %c0_6 = arith.constant 0 : index
    %c0_7 = arith.constant 0 : index
    %6 = vector.load %arg3[%c0_5, %c0_6, %c0_7] : memref<1x8x1xf32, #tpu.memory_space<vmem>>, vector<1x8x1xf32>
    %7 = vector.shape_cast %6 : vector<1x8x1xf32> to vector<8x1xf32>
    %c64 = arith.constant 64 : index
    %c0_8 = arith.constant 0 : index
    %8 = vector.load %arg7[%c64, %c0_8] : memref<72x1xf32, #tpu.memory_space<vmem>>, vector<8x1xf32>
    tpu.vector_store %arg7[%c64, %c0_8], %7 {strides = array<i32>} : memref<72x1xf32, #tpu.memory_space<vmem>>, vector<8x1xf32>,
    %cst = arith.constant 0.000000e+00 : f32
    %9 = vector.broadcast %cst : f32 to vector<32x32xf32>
    %c0_9 = arith.constant 0 : index
    %c0_10 = arith.constant 0 : index
    %10 = tpu.strided_load %arg7[%c0_9, %c0_10] {strides = array<i32: 2, 1>} : memref<72x1xf32, #tpu.memory_space<vmem>>, vector<32x1xf32>
    %c0_11 = arith.constant 0 : index
    %c0_12 = arith.constant 0 : index
    %11 = vector.load %arg4[%c0_11, %c0_12] : memref<4x32xf32, #tpu.memory_space<vmem>>, vector<1x32xf32>
    %12 = vector.broadcast %10 : vector<32x1xf32> to vector<32x32xf32>
    %13 = vector.broadcast %11 : vector<1x32xf32> to vector<32x32xf32>
    %14 = arith.mulf %12, %13 : vector<32x32xf32>
    %15 = arith.addf %9, %14 : vector<32x32xf32>
    %c1 = arith.constant 1 : index
    %c0_13 = arith.constant 0 : index
    %16 = tpu.strided_load %arg7[%c1, %c0_13] {strides = array<i32: 2, 1>} : memref<72x1xf32, #tpu.memory_space<vmem>>, vector<32x1xf32>
    %c1_14 = arith.constant 1 : index
    %c0_15 = arith.constant 0 : index
    %17 = vector.load %arg4[%c1_14, %c0_15] : memref<4x32xf32, #tpu.memory_space<vmem>>, vector<1x32xf32>
    %18 = vector.broadcast %16 : vector<32x1xf32> to vector<32x32xf32>
    %19 = vector.broadcast %17 : vector<1x32xf32> to vector<32x32xf32>
    %20 = arith.mulf %18, %19 : vector<32x32xf32>
    %21 = arith.addf %15, %20 : vector<32x32xf32>
    %c2 = arith.constant 2 : index
    %c0_16 = arith.constant 0 : index
    %22 = tpu.strided_load %arg7[%c2, %c0_16] {strides = array<i32: 2, 1>} : memref<72x1xf32, #tpu.memory_space<vmem>>, vector<32x1xf32>
    %c2_17 = arith.constant 2 : index
    %c0_18 = arith.constant 0 : index
    %23 = vector.load %arg4[%c2_17, %c0_18] : memref<4x32xf32, #tpu.memory_space<vmem>>, vector<1x32xf32>
    %24 = vector.broadcast %22 : vector<32x1xf32> to vector<32x32xf32>
    %25 = vector.broadcast %23 : vector<1x32xf32> to vector<32x32xf32>
    %26 = arith.mulf %24, %25 : vector<32x32xf32>
    %27 = arith.addf %21, %26 : vector<32x32xf32>
    %c3 = arith.constant 3 : index
    %c0_19 = arith.constant 0 : index
    %28 = tpu.strided_load %arg7[%c3, %c0_19] {strides = array<i32: 2, 1>} : memref<72x1xf32, #tpu.memory_space<vmem>>, vector<32x1xf32>
    %c3_20 = arith.constant 3 : index
    %c0_21 = arith.constant 0 : index
    %29 = vector.load %arg4[%c3_20, %c0_21] : memref<4x32xf32, #tpu.memory_space<vmem>>, vector<1x32xf32>
    %30 = vector.broadcast %28 : vector<32x1xf32> to vector<32x32xf32>
    %31 = vector.broadcast %29 : vector<1x32xf32> to vector<32x32xf32>
    %32 = arith.mulf %30, %31 : vector<32x32xf32>
    %33 = arith.addf %27, %32 : vector<32x32xf32>
    %c32_i32 = arith.constant 32 : i32
    %34 = arith.muli %arg1, %c32_i32 : i32
    %35 = tpu.iota {dimensions = array<i32: 0>} : vector<32x1xi32>
    %36 = vector.broadcast %34 : i32 to vector<32x1xi32>
    %37 = arith.addi %36, %35 : vector<32x1xi32>
    %c31_i32 = arith.constant 31 : i32
    %38 = vector.broadcast %c31_i32 : i32 to vector<32x1xi32>
    %39 = arith.cmpi slt, %37, %38 : vector<32x1xi32>
    %cst_22 = arith.constant 0.000000e+00 : f32
    %40 = vector.shape_cast %39 : vector<32x1xi1> to vector<32x1xi1>
    %41 = vector.broadcast %40 : vector<32x1xi1> to vector<32x32xi1>
    %42 = vector.broadcast %cst_22 : f32 to vector<32x32xf32>
    %43 = arith.select %41, %33, %42 : vector<32x32xi1>, vector<32x32xf32>
    %c0_23 = arith.constant 0 : index
    %c0_24 = arith.constant 0 : index
    %c0_25 = arith.constant 0 : index
    %44 = vector.load %arg5[%c0_23, %c0_24, %c0_25] : memref<1x1x32xf32, #tpu.memory_space<vmem>>, vector<1x1x32xf32>
    %45 = vector.shape_cast %44 : vector<1x1x32xf32> to vector<1x32xf32>
    %cst_26 = arith.constant dense<0.000000e+00> : vector<32xf32>
    %46 = vector.multi_reduction <add>, %43, %cst_26 [0] : vector<32x32xf32> to vector<32xf32>
    %47 = vector.shape_cast %46 : vector<32xf32> to vector<1x32xf32>
    %48 = arith.addf %45, %47 : vector<1x32xf32>
    %c0_27 = arith.constant 0 : index
    %c0_28 = arith.constant 0 : index
    %c0_29 = arith.constant 0 : index
    %49 = vector.load %arg5[%c0_27, %c0_28, %c0_29] : memref<1x1x32xf32, #tpu.memory_space<vmem>>, vector<1x1x32xf32>
    %50 = vector.shape_cast %49 : vector<1x1x32xf32> to vector<1x32xf32>
    %51 = vector.shape_cast %48 : vector<1x32xf32> to vector<1x1x32xf32>
    tpu.vector_store %arg5[%c0_27, %c0_28, %c0_29], %51 {strides = array<i32>} : memref<1x1x32xf32, #tpu.memory_space<vmem>>, vector<1x1x32xf32>,
    %c0_30 = arith.constant 0 : index
    %c0_31 = arith.constant 0 : index
    %c0_32 = arith.constant 0 : index
    %52 = vector.load %arg6[%c0_30, %c0_31, %c0_32] : memref<1x1x32xf32, #tpu.memory_space<vmem>>, vector<1x1x32xf32>
    %53 = vector.shape_cast %52 : vector<1x1x32xf32> to vector<1x32xf32>
    %54 = arith.mulf %43, %43 : vector<32x32xf32>
    %cst_33 = arith.constant dense<0.000000e+00> : vector<32xf32>
    %55 = vector.multi_reduction <add>, %54, %cst_33 [0] : vector<32x32xf32> to vector<32xf32>
    %56 = vector.shape_cast %55 : vector<32xf32> to vector<1x32xf32>
    %57 = arith.addf %53, %56 : vector<1x32xf32>
    %c0_34 = arith.constant 0 : index
    %c0_35 = arith.constant 0 : index
    %c0_36 = arith.constant 0 : index
    %58 = vector.load %arg6[%c0_34, %c0_35, %c0_36] : memref<1x1x32xf32, #tpu.memory_space<vmem>>, vector<1x1x32xf32>
    %59 = vector.shape_cast %58 : vector<1x1x32xf32> to vector<1x32xf32>
    %60 = vector.shape_cast %57 : vector<1x32xf32> to vector<1x1x32xf32>
    tpu.vector_store %arg6[%c0_34, %c0_35, %c0_36], %60 {strides = array<i32>} : memref<1x1x32xf32, #tpu.memory_space<vmem>>, vector<1x1x32xf32>,
    return
  }
  func.func @transform_0(%arg0: i32, %arg1: i32) -> (i32, i32, i32) {
    %c0_i32 = arith.constant 0 : i32
    %c0_i32_0 = arith.constant 0 : i32
    return %arg0, %arg1, %c0_i32 : i32, i32, i32
  }
  func.func @transform_1(%arg0: i32, %arg1: i32) -> (i32, i32, i32) {
    %c1_i32 = arith.constant 1 : i32
    %0 = arith.addi %arg1, %c1_i32 : i32
    %c8_i32 = arith.constant 8 : i32
    %1 = arith.muli %0, %c8_i32 : i32
    %c0_i32 = arith.constant 0 : i32
    %c0_i32_0 = arith.constant 0 : i32
    return %arg0, %1, %c0_i32 : i32, i32, i32
  }
  func.func @transform_2(%arg0: i32, %arg1: i32) -> (i32, i32) {
    %c0_i32 = arith.constant 0 : i32
    %c0_i32_0 = arith.constant 0 : i32
    %c0_i32_1 = arith.constant 0 : i32
    return %c0_i32, %c0_i32_0 : i32, i32
  }
  func.func @transform_3(%arg0: i32, %arg1: i32) -> (i32, i32, i32) {
    %c0_i32 = arith.constant 0 : i32
    %c0_i32_0 = arith.constant 0 : i32
    %c0_i32_1 = arith.constant 0 : i32
    return %arg0, %c0_i32, %c0_i32_0 : i32, i32, i32
  }
  func.func @transform_4(%arg0: i32, %arg1: i32) -> (i32, i32, i32) {
    %c0_i32 = arith.constant 0 : i32
    %c0_i32_0 = arith.constant 0 : i32
    %c0_i32_1 = arith.constant 0 : i32
    return %arg0, %c0_i32, %c0_i32_0 : i32, i32, i32
  }
}

</mosaic_0001>

<llo_original>
// kernel: tpu_custom_call.1
$region0: #{tpu_custom_call.1}
  #allocation0 [shape = 'u32[]', space=smem, size = 0x4, offset = 0x4, fixed_abs, tag = 'smem constant byte address 0x4 - core index']
  #allocation1 [shape = 'u32[144,128]{1,0:T(1,128)}', space=vmem, size = 0x12000, scoped, tag = 'internal scratch']
  #allocation2 [shape = 'f32[72,1]{1,0:T(8,128)}', space=vmem, size = 0x9000, scoped, tag = 'scratch operand']
  %s0 = inlined_call_operand.vmem [shape: f32[2,72,1], index: 0, kind: input, shape index: {}]
  %s1 = inlined_call_operand.vmem [shape: f32[2,72,1], index: 1, kind: input, shape index: {}]
  %s2 = inlined_call_operand.vmem [shape: f32[4,32], index: 2, kind: input, shape index: {}]
  %s3 = inlined_call_operand.hbm [shape: f32[2,1,32], index: 3, kind: output, shape index: {0}]
  %s4 = inlined_call_operand.hbm [shape: f32[2,1,32], index: 4, kind: output, shape index: {1}]
  %5 = xla_tuple %s3, %s4
  %s6 = sld [smem:[#allocation0]]
  $region57: #{tpu_custom_call.1} parent=0
    _
  %s8 = ssub.s32 1, %s6
  %s9 = scalar_select 0, %s8, %s6
  $region1: #{tpu_custom_call.1} parent=0
    #allocation3 [shape = 'u8[1024]{0}', space=vmem, size = 0x400, scoped, tag = 'output window, operand 0']
    #allocation4 [shape = 's32[2]{0}', space=sflag, size = 0x8, scoped, tag = 'scoped memory for tpu_custom_call.1']
    #allocation5 [shape = 'u8[1024]{0}', space=vmem, size = 0x400, scoped, tag = 'output window, operand 1']
    #allocation6 [shape = 's32[2]{0}', space=sflag, size = 0x8, scoped, tag = 'scoped memory for tpu_custom_call.1']
    %10 = vsyncpa [#allocation4], 0
    %s11 = scalar_lea.sflag [#allocation4], 1
    %12 = vsyncpa %s11, 0
    %13 = vsyncpa [#allocation6], 0
    %s14 = scalar_lea.sflag [#allocation6], 1
    %15 = vsyncpa %s14, 0
    loop: start=0, step=1, limit=4
    $region2: #{tpu_custom_call.1} parent=1 // loop_pre_header
      _
    $region3: #{tpu_custom_call.1} parent=1 // loop_header
      %s17 = sphi 0, %s21
      %p18 = scmp.ge.s32.totalorder %s17, 4
      %s24 = sphi 0, %s36
      %s25 = sphi 0, %s32
      %s26 = sphi 0, %s24
      %s27 = sphi 0, %s25
      %s28 = sphi 0, %s26
      %s29 = sphi 0, %s27
      %s41 = sphi 0, %s43
      %s44 = sphi 0, %s41
      %s45 = sphi 0, %s44
      %s61 = sphi 0, %s45
      %s73 = sphi 0, %s75
      %s76 = sphi 0, %s73
      %s77 = sphi 0, %s76
      %s93 = sphi 0, %s77
      %s97 = sphi 0, %s97
      %s99 = sphi 0, %s97
      %s100 = sphi 0, %s99
      %s114 = sphi 0, %s100
      %s120 = sphi 0, %s122
      %s123 = sphi 0, %s120
      %s124 = sphi 0, %s123
      %s140 = sphi 0, %s124
      %s146 = sphi 0, %s148
      %s149 = sphi 0, %s146
      %s150 = sphi 0, %s149
      %s166 = sphi 0, %s150
    $region4: #{tpu_custom_call.1} parent=1 // loop_header_branch
      %20 = sbr.rel (%p18) target = $region8
    $region5: #{tpu_custom_call.1} parent=1 // loop_body
      %s22 = ssub.s32 %s17, 1
      %s23 = ssub.s32 %s17, 2
      %s30 = sadd.s32 1, %s25
      %p31 = scmp.ge.s32.totalorder %s30, 1
      %s32 = scalar_select %p31, 0, %s30
      %s33 = sadd.s32 1, %s24
      %s34 = scalar_select %p31, %s33, %s24
      %p35 = scmp.ge.s32.totalorder %s34, 2
      %s36 = scalar_select %p35, 0, %s34
      %s37 = ssub.s32 %s24, %s36
      %s38 = ssub.s32 %s25, %s32
      %s39 = sor.u32 %s37, %s38
      %p40 = scmp.eq.s32.totalorder %s39, 0
      %s42 = sadd.s32 %s41, 1
      %s43 = scalar_select %p40, %s41, %s42
      %p46 = pneg %p40
      %p47 = scmp.eq.s32.totalorder %s17, 1
      %p48 = por %p46, %p47
      %p49 = scmp.ne.s32.totalorder %s41, %s44
      %p50 = scmp.eq.s32.totalorder %s17, 0
      %p51 = por %p49, %p50
      %p52 = scmp.ne.s32.totalorder %s41, %s44
      %p53 = scmp.eq.s32.totalorder %s22, 1
      %p54 = por %p52, %p53
      %p55 = scmp.ne.s32.totalorder %s44, %s45
      %p56 = scmp.eq.s32.totalorder %s22, 0
      %p57 = por %p55, %p56
      %p58 = scmp.ne.s32.totalorder %s44, %s45
      %p59 = scmp.eq.s32.totalorder %s23, 1
      %p60 = por %p58, %p59
      %p62 = scmp.ne.s32.totalorder %s45, %s61
      %p63 = scmp.eq.s32.totalorder %s23, 0
      %p64 = por %p62, %p63
      %s65 = sadd.s32 %s25, 1
      %s66 = smul.u32 %s65, 8
      %s67 = sadd.s32 %s32, 1
      %s68 = smul.u32 %s67, 8
      %s69 = ssub.s32 %s24, %s36
      %s70 = ssub.s32 %s66, %s68
      %s71 = sor.u32 %s69, %s70
      %p72 = scmp.eq.s32.totalorder %s71, 0
      %s74 = sadd.s32 %s73, 1
      %s75 = scalar_select %p72, %s73, %s74
      %p78 = pneg %p72
      %p79 = scmp.eq.s32.totalorder %s17, 1
      %p80 = por %p78, %p79
      %p81 = scmp.ne.s32.totalorder %s73, %s76
      %p82 = scmp.eq.s32.totalorder %s17, 0
      %p83 = por %p81, %p82
      %p84 = scmp.ne.s32.totalorder %s73, %s76
      %p85 = scmp.eq.s32.totalorder %s22, 1
      %p86 = por %p84, %p85
      %p87 = scmp.ne.s32.totalorder %s76, %s77
      %p88 = scmp.eq.s32.totalorder %s22, 0
      %p89 = por %p87, %p88
      %p90 = scmp.ne.s32.totalorder %s76, %s77
      %p91 = scmp.eq.s32.totalorder %s23, 1
      %p92 = por %p90, %p91
      %p94 = scmp.ne.s32.totalorder %s77, %s93
      %p95 = scmp.eq.s32.totalorder %s23, 0
      %p96 = por %p94, %p95
      %s98 = sadd.s32 %s97, 1
      %p101 = scmp.eq.s32.totalorder %s17, 1
      %p102 = scmp.ne.s32.totalorder %s97, %s99
      %p103 = scmp.eq.s32.totalorder %s17, 0
      %p104 = por %p102, %p103
      %p105 = scmp.ne.s32.totalorder %s97, %s99
      %p106 = scmp.eq.s32.totalorder %s22, 1
      %p107 = por %p105, %p106
      %p108 = scmp.ne.s32.totalorder %s99, %s100
      %p109 = scmp.eq.s32.totalorder %s22, 0
      %p110 = por %p108, %p109
      %p111 = scmp.ne.s32.totalorder %s99, %s100
      %p112 = scmp.eq.s32.totalorder %s23, 1
      %p113 = por %p111, %p112
      %p115 = scmp.ne.s32.totalorder %s100, %s114
      %p116 = scmp.eq.s32.totalorder %s23, 0
      %p117 = por %p115, %p116
      %s118 = ssub.s32 %s24, %s36
      %p119 = scmp.eq.s32.totalorder %s118, 0
      %s121 = sadd.s32 %s120, 1
      %s122 = scalar_select %p119, %s120, %s121
      %p125 = pneg %p119
      %p126 = scmp.eq.s32.totalorder %s17, 1
      %p127 = por %p125, %p126
      %p128 = scmp.ne.s32.totalorder %s120, %s123
      %p129 = scmp.eq.s32.totalorder %s17, 0
      %p130 = por %p128, %p129
      %p131 = scmp.ne.s32.totalorder %s120, %s123
      %p132 = scmp.eq.s32.totalorder %s22, 1
      %p133 = por %p131, %p132
      %p134 = scmp.ne.s32.totalorder %s123, %s124
      %p135 = scmp.eq.s32.totalorder %s22, 0
      %p136 = por %p134, %p135
      %p137 = scmp.ne.s32.totalorder %s123, %s124
      %p138 = scmp.eq.s32.totalorder %s23, 1
      %p139 = por %p137, %p138
      %p141 = scmp.ne.s32.totalorder %s124, %s140
      %p142 = scmp.eq.s32.totalorder %s23, 0
      %p143 = por %p141, %p142
      %s144 = ssub.s32 %s24, %s36
      %p145 = scmp.eq.s32.totalorder %s144, 0
      %s147 = sadd.s32 %s146, 1
      %s148 = scalar_select %p145, %s146, %s147
      %p151 = pneg %p145
      %p152 = scmp.eq.s32.totalorder %s17, 1
      %p153 = por %p151, %p152
      %p154 = scmp.ne.s32.totalorder %s146, %s149
      %p155 = scmp.eq.s32.totalorder %s17, 0
      %p156 = por %p154, %p155
      %p157 = scmp.ne.s32.totalorder %s146, %s149
      %p158 = scmp.eq.s32.totalorder %s22, 1
      %p159 = por %p157, %p158
      %p160 = scmp.ne.s32.totalorder %s149, %s150
      %p161 = scmp.eq.s32.totalorder %s22, 0
      %p162 = por %p160, %p161
      %p163 = scmp.ne.s32.totalorder %s149, %s150
      %p164 = scmp.eq.s32.totalorder %s23, 1
      %p165 = por %p163, %p164
      %p167 = scmp.ne.s32.totalorder %s150, %s166
      %p168 = scmp.eq.s32.totalorder %s23, 0
      %p169 = por %p167, %p168
      %p170 = scmp.le.s32.totalorder 1, %s17
      %p171 = scmp.lt.s32.totalorder %s17, 3
      %p172 = pnand %p170, %p171
      %p173 = pneg %p172
      // Predicated region
      $region9: #{tpu_custom_call.1} parent=5 // pred_check
        _
      $region10: #{tpu_custom_call.1} parent=5 // pred_check_branch
        %175 = sbr.rel (%p172) target = $region12
      $region11: #{tpu_custom_call.1} parent=5 // pred_region
        %s176 = ssub.s32 %s17, 1
        // Predicated region
        $region13: #{tpu_custom_call.1} parent=11 // pred_check
          %p177 = pneg %p110
        $region14: #{tpu_custom_call.1} parent=11 // pred_check_branch
          %179 = sbr.rel (%p177) target = $region16
        $region15: #{tpu_custom_call.1} parent=11 // pred_region
          _
        $region16: #{tpu_custom_call.1} parent=11 // pred_fallthru
          _
      $region12: #{tpu_custom_call.1} parent=5 // pred_fallthru
        _
      %p180 = scmp.lt.s32.totalorder %s17, 2
      // Predicated region
      $region17: #{tpu_custom_call.1} parent=5 // pred_check
        %p181 = pneg %p180
      $region18: #{tpu_custom_call.1} parent=5 // pred_check_branch
        %183 = sbr.rel (%p181) target = $region20
      $region19: #{tpu_custom_call.1} parent=5 // pred_region
        // Predicated region
        $region21: #{tpu_custom_call.1} parent=19 // pred_check
          %p184 = pneg %p51
        $region22: #{tpu_custom_call.1} parent=19 // pred_check_branch
          %186 = sbr.rel (%p184) target = $region24
        $region23: #{tpu_custom_call.1} parent=19 // pred_region
          %s187 = smul.u32 8, %s25
          %s188 = ssub.s32 9, %s187
          %p189 = scmp.lt.s32.totalorder %s188, 8
          %s190 = scalar_select %p189, %s188, 8
          %s191 = smul.u32 128, %s190
          %p192 = scmp.lt.s32.totalorder %s24, 1
          %s193 = scalar_select %p192, %s24, 1
          %p194 = scmp.lt.s32.totalorder %s187, 8
          %s195 = scalar_select %p194, %s187, 8
          %s196 = smul.addr %s193, 9
          %s197 = sadd.s32 %s195, %s196
          %s198 = smul.addr %s197, 8
          %s199 = scalar_lea.vmem %s0, %s198
          %s200 = smul.u32 8, %s25
          %s201 = ssub.s32 9, %s200
          %p202 = scmp.lt.s32.totalorder %s201, 8
          %s203 = scalar_select %p202, %s201, 8
          %s204 = smul.u32 128, %s203
        $region24: #{tpu_custom_call.1} parent=19 // pred_fallthru
          _
        // Predicated region
        $region25: #{tpu_custom_call.1} parent=19 // pred_check
          %p205 = pneg %p83
        $region26: #{tpu_custom_call.1} parent=19 // pred_check_branch
          %207 = sbr.rel (%p205) target = $region28
        $region27: #{tpu_custom_call.1} parent=19 // pred_region
          %s208 = sadd.s32 %s25, 1
          %s209 = smul.u32 %s208, 8
          %p210 = scmp.lt.s32.totalorder %s24, 1
          %s211 = scalar_select %p210, %s24, 1
          %p212 = scmp.lt.s32.totalorder %s209, 8
          %s213 = scalar_select %p212, %s209, 8
          %s214 = smul.addr %s211, 9
          %s215 = sadd.s32 %s213, %s214
          %s216 = smul.addr %s215, 8
          %s217 = scalar_lea.vmem %s1, %s216
          %s218 = sadd.s32 %s25, 1
          %s219 = smul.u32 %s218, 8
        $region28: #{tpu_custom_call.1} parent=19 // pred_fallthru
          _
      $region20: #{tpu_custom_call.1} parent=5 // pred_fallthru
        _
      %p220 = scmp.le.s32.totalorder 1, %s17
      %p221 = scmp.lt.s32.totalorder %s17, 3
      %p222 = pnand %p220, %p221
      %p223 = pneg %p222
      // Predicated region
      $region29: #{tpu_custom_call.1} parent=5 // pred_check
        _
      $region30: #{tpu_custom_call.1} parent=5 // pred_check_branch
        %225 = sbr.rel (%p222) target = $region32
      $region31: #{tpu_custom_call.1} parent=5 // pred_region
        %s226 = ssub.s32 %s17, 1
        %s227 = smul.u32 8, %s27
        %s228 = ssub.s32 9, %s227
        %p229 = scmp.lt.s32.totalorder %s228, 8
        %s230 = scalar_select %p229, %s228, 8
        %s231 = smul.u32 128, %s230
        %p232 = scmp.lt.s32.totalorder %s26, 1
        %s233 = scalar_select %p232, %s26, 1
        %p234 = scmp.lt.s32.totalorder %s227, 8
        %s235 = scalar_select %p234, %s227, 8
        %s236 = smul.addr %s233, 9
        %s237 = sadd.s32 %s235, %s236
        %s238 = smul.addr %s237, 8
        %s239 = scalar_lea.vmem %s0, %s238
        %p240 = pneg %p57
        %p241 = pneg %p54
        %s242 = sadd.s32 %s27, 1
        %s243 = smul.u32 %s242, 8
        %p244 = scmp.lt.s32.totalorder %s26, 1
        %s245 = scalar_select %p244, %s26, 1
        %p246 = scmp.lt.s32.totalorder %s243, 8
        %s247 = scalar_select %p246, %s243, 8
        %s248 = smul.addr %s245, 9
        %s249 = sadd.s32 %s247, %s248
        %s250 = smul.addr %s249, 8
        %s251 = scalar_lea.vmem %s1, %s250
        %p252 = pneg %p89
        %p253 = pneg %p86
        %p254 = pneg %p110
        %p255 = pneg %p107
        %p256 = pneg %p136
        %p257 = pneg %p133
        %s258 = sand.u32 %s123, 1
        %s259 = scalar_lea.sflag [#allocation4], %s258
        %s260 = sand.u32 %s123, 1
        %s261 = scalar_lea.vmem [#allocation3], %s260
        %p262 = pneg %p162
        %p263 = pneg %p159
        %s264 = sand.u32 %s149, 1
        %s265 = scalar_lea.sflag [#allocation6], %s264
        %s266 = sand.u32 %s149, 1
        %s267 = scalar_lea.vmem [#allocation5], %s266
        %s268 = smul.u32 8, %s27
        %s269 = ssub.s32 9, %s268
        %p270 = scmp.lt.s32.totalorder %s269, 8
        %s271 = scalar_select %p270, %s269, 8
        %s272 = smul.u32 128, %s271
        %p273 = scmp.lt.s32.totalorder %s26, 1
        %s274 = scalar_select %p273, %s26, 1
        %p275 = scmp.lt.s32.totalorder %s268, 8
        %s276 = scalar_select %p275, %s268, 8
        %s277 = smul.addr %s274, 9
        %s278 = sadd.s32 %s276, %s277
        %s279 = smul.addr %s278, 8
        %s280 = scalar_lea.vmem %s0, %s279
        %s281 = smul.u32 8, %s27
        %s282 = ssub.s32 9, %s281
        %p283 = scmp.lt.s32.totalorder %s282, 8
        %s284 = scalar_select %p283, %s282, 8
        %s285 = smul.u32 128, %s284
        %s286 = sadd.s32 %s27, 1
        %s287 = smul.u32 %s286, 8
        %p288 = scmp.lt.s32.totalorder %s26, 1
        %s289 = scalar_select %p288, %s26, 1
        %p290 = scmp.lt.s32.totalorder %s287, 8
        %s291 = scalar_select %p290, %s287, 8
        %s292 = smul.addr %s289, 9
        %s293 = sadd.s32 %s291, %s292
        %s294 = smul.addr %s293, 8
        %s295 = scalar_lea.vmem %s1, %s294
        %s296 = sadd.s32 %s27, 1
        %s297 = smul.u32 %s296, 8
        %p298 = scmp.eq.s32.totalorder %s27, 0
        // Predicated region
        $region33: #{tpu_custom_call.1} parent=31 // pred_check
          %p299 = pneg %p298
        $region34: #{tpu_custom_call.1} parent=31 // pred_check_branch
          %301 = sbr.rel (%p299) target = $region36
        $region35: #{tpu_custom_call.1} parent=31 // pred_region
          %vm302 = vcmask 253952
          %303 = vst.msk [vmem:[%s261] sm:$0x1] %vm302, 0.0
          %304 = vst.msk [vmem:[%s267] sm:$0x1] %vm302, 0.0
        $region36: #{tpu_custom_call.1} parent=31 // pred_fallthru
          _
        %v305 = vld [vmem:[%s280] sm:$0xff]
        %v306 = vld [vmem:[%s280 + $0x8] sm:$0xff]
        %v307 = vld [vmem:[%s280 + $0x10] sm:$0xff]
        %v308 = vld [vmem:[%s280 + $0x18] sm:$0xff]
        %v309 = vld [vmem:[%s280 + $0x20] sm:$0xff]
        %v310 = vld [vmem:[%s280 + $0x28] sm:$0xff]
        %v311 = vld [vmem:[%s280 + $0x30] sm:$0xff]
        %v312 = vld [vmem:[%s280 + $0x38] sm:$0xff]
        %vm313 = vcmask 7168
        %314 = vst.msk [vmem:[#allocation2] sm:$0xff] %vm313, %v305
        %315 = vst.msk [vmem:[#allocation2 + $0x8] sm:$0xff] %vm313, %v306
        %316 = vst.msk [vmem:[#allocation2 + $0x10] sm:$0xff] %vm313, %v307
        %317 = vst.msk [vmem:[#allocation2 + $0x18] sm:$0xff] %vm313, %v308
        %318 = vst.msk [vmem:[#allocation2 + $0x20] sm:$0xff] %vm313, %v309
        %319 = vst.msk [vmem:[#allocation2 + $0x28] sm:$0xff] %vm313, %v310
        %320 = vst.msk [vmem:[#allocation2 + $0x30] sm:$0xff] %vm313, %v311
        %321 = vst.msk [vmem:[#allocation2 + $0x38] sm:$0xff] %vm313, %v312
        %v322 = vld [vmem:[%s295] sm:$0xff]
        %323 = vst.msk [vmem:[#allocation2 + $0x40] sm:$0xff] %vm313, %v322
        %v324 = vld [vmem:[#allocation2] ss:$2 sm:$0xff]
        %s325 = scalar_lea.vmem [#allocation2], 16
        %v326 = vld [vmem:[%s325] ss:$2 sm:$0xff]
        %s327 = scalar_lea.vmem [#allocation2], 32
        %v328 = vld [vmem:[%s327] ss:$2 sm:$0xff]
        %s329 = scalar_lea.vmem [#allocation2], 48
        %v330 = vld [vmem:[%s329] ss:$2 sm:$0xff]
        %v331 = vld [vmem:[%s2] sm:$0x1]
        %333 = vset.pattern.permute.xlu0 0
        %334 = vperm.xlu0 %333, %v324
        %v335 = vpop.permute.xlu0 %334
        %338 = vset.pattern.permute.xlu0 0
        %339 = vperm.xlu0 %338, %v326
        %v340 = vpop.permute.xlu0 %339
        %343 = vset.pattern.permute.xlu0 0
        %344 = vperm.xlu0 %343, %v328
        %v345 = vpop.permute.xlu0 %344
        %348 = vset.pattern.permute.xlu0 0
        %349 = vperm.xlu0 %348, %v330
        %v350 = vpop.permute.xlu0 %349
        %v352 = vlaneseq
        %v353 = vshrl.u32 %v352, 7
        %v354 = vsub.s32 0, %v353
        %v355 = vrot.slane %v331, %v354
        %v356 = vmul.f32 %v335, %v355
        %v357 = vmul.f32 %v340, %v355
        %v358 = vmul.f32 %v345, %v355
        %v359 = vmul.f32 %v350, %v355
        %v360 = vadd.f32 %v356, 0.0
        %v361 = vadd.f32 %v357, 0.0
        %v362 = vadd.f32 %v358, 0.0
        %v363 = vadd.f32 %v359, 0.0
        %s364 = scalar_lea.vmem [#allocation2], 1
        %v365 = vld [vmem:[%s364] ss:$2 sm:$0xff]
        %s366 = scalar_lea.vmem [#allocation2], 17
        %v367 = vld [vmem:[%s366] ss:$2 sm:$0xff]
        %s368 = scalar_lea.vmem [#allocation2], 33
        %v369 = vld [vmem:[%s368] ss:$2 sm:$0xff]
        %s370 = scalar_lea.vmem [#allocation2], 49
        %v371 = vld [vmem:[%s370] ss:$2 sm:$0xff]
        %v372 = vld [vmem:[%s2 + $0x1] sm:$0x1]
        %374 = vset.pattern.permute.xlu0 0
        %375 = vperm.xlu0 %374, %v365
        %v376 = vpop.permute.xlu0 %375
        %379 = vset.pattern.permute.xlu0 0
        %380 = vperm.xlu0 %379, %v367
        %v381 = vpop.permute.xlu0 %380
        %384 = vset.pattern.permute.xlu0 0
        %385 = vperm.xlu0 %384, %v369
        %v386 = vpop.permute.xlu0 %385
        %389 = vset.pattern.permute.xlu0 0
        %390 = vperm.xlu0 %389, %v371
        %v391 = vpop.permute.xlu0 %390
        %v393 = vlaneseq
        %v394 = vshrl.u32 %v393, 7
        %v395 = vsub.s32 0, %v394
        %v396 = vrot.slane %v372, %v395
        %v397 = vmul.f32 %v376, %v396
        %v398 = vmul.f32 %v381, %v396
        %v399 = vmul.f32 %v386, %v396
        %v400 = vmul.f32 %v391, %v396
        %v401 = vadd.f32 %v360, %v397
        %v402 = vadd.f32 %v361, %v398
        %v403 = vadd.f32 %v362, %v399
        %v404 = vadd.f32 %v363, %v400
        %s405 = scalar_lea.vmem [#allocation2], 2
        %v406 = vld [vmem:[%s405] ss:$2 sm:$0xff]
        %s407 = scalar_lea.vmem [#allocation2], 18
        %v408 = vld [vmem:[%s407] ss:$2 sm:$0xff]
        %s409 = scalar_lea.vmem [#allocation2], 34
        %v410 = vld [vmem:[%s409] ss:$2 sm:$0xff]
        %s411 = scalar_lea.vmem [#allocation2], 50
        %v412 = vld [vmem:[%s411] ss:$2 sm:$0xff]
        %v413 = vld [vmem:[%s2 + $0x2] sm:$0x1]
        %415 = vset.pattern.permute.xlu0 0
        %416 = vperm.xlu0 %415, %v406
        %v417 = vpop.permute.xlu0 %416
        %420 = vset.pattern.permute.xlu0 0
        %421 = vperm.xlu0 %420, %v408
        %v422 = vpop.permute.xlu0 %421
        %425 = vset.pattern.permute.xlu0 0
        %426 = vperm.xlu0 %425, %v410
        %v427 = vpop.permute.xlu0 %426
        %430 = vset.pattern.permute.xlu0 0
        %431 = vperm.xlu0 %430, %v412
        %v432 = vpop.permute.xlu0 %431
        %v434 = vlaneseq
        %v435 = vshrl.u32 %v434, 7
        %v436 = vsub.s32 0, %v435
        %v437 = vrot.slane %v413, %v436
        %v438 = vmul.f32 %v417, %v437
        %v439 = vmul.f32 %v422, %v437
        %v440 = vmul.f32 %v427, %v437
        %v441 = vmul.f32 %v432, %v437
        %v442 = vadd.f32 %v401, %v438
        %v443 = vadd.f32 %v402, %v439
        %v444 = vadd.f32 %v403, %v440
        %v445 = vadd.f32 %v404, %v441
        %s446 = scalar_lea.vmem [#allocation2], 3
        %v447 = vld [vmem:[%s446] ss:$2 sm:$0xff]
        %s448 = scalar_lea.vmem [#allocation2], 19
        %v449 = vld [vmem:[%s448] ss:$2 sm:$0xff]
        %s450 = scalar_lea.vmem [#allocation2], 35
        %v451 = vld [vmem:[%s450] ss:$2 sm:$0xff]
        %s452 = scalar_lea.vmem [#allocation2], 51
        %v453 = vld [vmem:[%s452] ss:$2 sm:$0xff]
        %v454 = vld [vmem:[%s2 + $0x3] sm:$0x1]
        %456 = vset.pattern.permute.xlu0 0
        %457 = vperm.xlu0 %456, %v447
        %v458 = vpop.permute.xlu0 %457
        %461 = vset.pattern.permute.xlu0 0
        %462 = vperm.xlu0 %461, %v449
        %v463 = vpop.permute.xlu0 %462
        %466 = vset.pattern.permute.xlu0 0
        %467 = vperm.xlu0 %466, %v451
        %v468 = vpop.permute.xlu0 %467
        %471 = vset.pattern.permute.xlu0 0
        %472 = vperm.xlu0 %471, %v453
        %v473 = vpop.permute.xlu0 %472
        %v475 = vlaneseq
        %v476 = vshrl.u32 %v475, 7
        %v477 = vsub.s32 0, %v476
        %v478 = vrot.slane %v454, %v477
        %v479 = vmul.f32 %v458, %v478
        %v480 = vmul.f32 %v463, %v478
        %v481 = vmul.f32 %v468, %v478
        %v482 = vmul.f32 %v473, %v478
        %v483 = vadd.f32 %v442, %v479
        %v484 = vadd.f32 %v443, %v480
        %v485 = vadd.f32 %v444, %v481
        %v486 = vadd.f32 %v445, %v482
        %s487 = smul.u32 %s27, 32
        %v488 = vlaneseq
        %v489 = vshrl.u32 %v488, 7
        %v490 = vadd.s32 %v489, 8
        %v491 = vadd.s32 %v489, 16
        %v492 = vadd.s32 %v489, 24
        %v493 = vstv %s487
        %v494 = vadd.s32 %v493, %v489
        %v495 = vadd.s32 %v493, %v490
        %v496 = vadd.s32 %v493, %v491
        %v497 = vadd.s32 %v493, %v492
        %vm498 = vcmp.lt.s32.totalorder %v494, 31
        %vm499 = vcmp.lt.s32.totalorder %v495, 31
        %vm500 = vcmp.lt.s32.totalorder %v496, 31
        %vm501 = vcmp.lt.s32.totalorder %v497, 31
        %v502 = vsel %vm498, 1, 0
        %v503 = vsel %vm499, 1, 0
        %v504 = vsel %vm500, 1, 0
        %v505 = vsel %vm501, 1, 0
        %vm506 = vcmp.eq.s32.totalorder %v502, 1
        %vm507 = vcmp.eq.s32.totalorder %v503, 1
        %vm508 = vcmp.eq.s32.totalorder %v504, 1
        %vm509 = vcmp.eq.s32.totalorder %v505, 1
        %v510 = vsel %vm506, %v483, 0.0
        %v511 = vsel %vm507, %v484, 0.0
        %v512 = vsel %vm508, %v485, 0.0
        %v513 = vsel %vm509, %v486, 0.0
        %v514 = vld [vmem:[%s261] sm:$0x1]
        %vm515 = vcmask 261120
        %v516 = vsel %vm515, %v510, 0.0
        %v517 = vsel %vm515, %v511, 0.0
        %v518 = vadd.f32 %v516, %v517
        %v519 = vsel %vm515, %v512, 0.0
        %v520 = vadd.f32 %v518, %v519
        %v521 = vsel %vm515, %v513, 0.0
        %v522 = vadd.f32 %v520, %v521
        %v523 = vrot.slane %v522, 4
        %v524 = vadd.f32 %v522, %v523
        %v525 = vrot.slane %v524, 2
        %v526 = vadd.f32 %v524, %v525
        %v527 = vrot.slane %v526, 1
        %v528 = vadd.f32 %v526, %v527
        %v529 = vadd.f32 %v514, %v528
        %vm530 = vcmask 253952
        %531 = vst.msk [vmem:[%s261] sm:$0x1] %vm530, %v529
        %v532 = vld [vmem:[%s267] sm:$0x1]
        %v533 = vmul.f32 %v510, %v510
        %v534 = vmul.f32 %v511, %v511
        %v535 = vmul.f32 %v512, %v512
        %v536 = vmul.f32 %v513, %v513
        %v537 = vsel %vm515, %v533, 0.0
        %v538 = vsel %vm515, %v534, 0.0
        %v539 = vadd.f32 %v537, %v538
        %v540 = vsel %vm515, %v535, 0.0
        %v541 = vadd.f32 %v539, %v540
        %v542 = vsel %vm515, %v536, 0.0
        %v543 = vadd.f32 %v541, %v542
        %v544 = vrot.slane %v543, 4
        %v545 = vadd.f32 %v543, %v544
        %v546 = vrot.slane %v545, 2
        %v547 = vadd.f32 %v545, %v546
        %v548 = vrot.slane %v547, 1
        %v549 = vadd.f32 %v547, %v548
        %v550 = vadd.f32 %v532, %v549
        %551 = vst.msk [vmem:[%s267] sm:$0x1] %vm530, %v550
        %s552 = sand.u32 %s123, 1
        %s553 = scalar_lea.sflag [#allocation4], %s552
        %s554 = sand.u32 %s123, 1
        %s555 = scalar_lea.vmem [#allocation3], %s554
        %s556 = sand.u32 %s149, 1
        %s557 = scalar_lea.sflag [#allocation6], %s556
        %s558 = sand.u32 %s149, 1
        %s559 = scalar_lea.vmem [#allocation5], %s558
        // Predicated region
        $region37: #{tpu_custom_call.1} parent=31 // pred_check
          %p560 = pneg %p133
        $region38: #{tpu_custom_call.1} parent=31 // pred_check_branch
          %562 = sbr.rel (%p560) target = $region40
        $region39: #{tpu_custom_call.1} parent=31 // pred_region
          %s564 = ssub.s32 16, 16
          %565 = vsyncadd %s553, %s564
          %s566 = smul.addr %s26, 16
          %s567 = scalar_lea.hbm %s3, %s566
          %s569 = sshll.u32 %s555, 4
          %s570 = int_to_ptr.vmem [resolvable:$true] %s569
          %572 = dma.vmem_to_hbm [thread:$0]  %s570, 16, %s567, %s553
        $region40: #{tpu_custom_call.1} parent=31 // pred_fallthru
          _
        // Predicated region
        $region41: #{tpu_custom_call.1} parent=31 // pred_check
          %p573 = pneg %p159
        $region42: #{tpu_custom_call.1} parent=31 // pred_check_branch
          %575 = sbr.rel (%p573) target = $region44
        $region43: #{tpu_custom_call.1} parent=31 // pred_region
          %s577 = ssub.s32 16, 16
          %578 = vsyncadd %s557, %s577
          %s579 = smul.addr %s26, 16
          %s580 = scalar_lea.hbm %s4, %s579
          %s582 = sshll.u32 %s559, 4
          %s583 = int_to_ptr.vmem [resolvable:$true] %s582
          %585 = dma.vmem_to_hbm [thread:$0]  %s583, 16, %s580, %s557
        $region44: #{tpu_custom_call.1} parent=31 // pred_fallthru
          _
      $region32: #{tpu_custom_call.1} parent=5 // pred_fallthru
        _
      %p586 = scmp.le.s32.totalorder 2, %s17
      // Predicated region
      $region45: #{tpu_custom_call.1} parent=5 // pred_check
        %p587 = pneg %p586
      $region46: #{tpu_custom_call.1} parent=5 // pred_check_branch
        %589 = sbr.rel (%p587) target = $region48
      $region47: #{tpu_custom_call.1} parent=5 // pred_region
        %s590 = ssub.s32 %s17, 2
        // Predicated region
        $region49: #{tpu_custom_call.1} parent=47 // pred_check
          %p591 = pneg %p139
        $region50: #{tpu_custom_call.1} parent=47 // pred_check_branch
          %593 = sbr.rel (%p591) target = $region52
        $region51: #{tpu_custom_call.1} parent=47 // pred_region
          %s594 = sand.u32 %s124, 1
          %s595 = scalar_lea.sflag [#allocation4], %s594
          %s596 = sand.u32 %s124, 1
          %s597 = scalar_lea.vmem [#allocation3], %s596
          %598 = dma.done %s595, 16
        $region52: #{tpu_custom_call.1} parent=47 // pred_fallthru
          _
        // Predicated region
        $region53: #{tpu_custom_call.1} parent=47 // pred_check
          %p599 = pneg %p165
        $region54: #{tpu_custom_call.1} parent=47 // pred_check_branch
          %601 = sbr.rel (%p599) target = $region56
        $region55: #{tpu_custom_call.1} parent=47 // pred_region
          %s602 = sand.u32 %s150, 1
          %s603 = scalar_lea.sflag [#allocation6], %s602
          %s604 = sand.u32 %s150, 1
          %s605 = scalar_lea.vmem [#allocation5], %s604
          %606 = dma.done %s603, 16
        $region56: #{tpu_custom_call.1} parent=47 // pred_fallthru
          _
      $region48: #{tpu_custom_call.1} parent=5 // pred_fallthru
        _
    $region6: #{tpu_custom_call.1} parent=1 // loop_footer
      %s21 = sadd.s32 1, %s17
    $region7: #{tpu_custom_call.1} parent=1 // loop_footer_branch
      %16 = sbr.rel target = $region3
    $region8: #{tpu_custom_call.1} parent=1 // loop_exit
      _
    %607 = vsyncpa [#allocation4], 1
    %s608 = scalar_lea.sflag [#allocation4], 1
    %609 = vsyncpa %s608, 1
    %610 = vsyncpa [#allocation6], 1
    %s611 = scalar_lea.sflag [#allocation6], 1
    %612 = vsyncpa %s611, 1

</llo_original>
